<compile_context>
chip_gen: v5e
topology: v5e:2x2
jax: 0.10.0
libtpu: 0.0.40
codegen_flags: <defaults>
</compile_context>

<pallas_src>
import functools

import jax
import jax.numpy as jnp
from jax.experimental import pallas as pl
from jax.experimental.pallas import tpu as pltpu


# ----------------------------- helpers ------------------------------------


def _round_up(x, m):
    return ((x + m - 1) // m) * m


def _vmem_capacity_bytes():
    """Physical VMEM of the current chip; conservative fallback (v7x)."""
    try:
        info = pltpu.get_tpu_info()
        cap = getattr(info, "vmem_capacity_bytes", None)
        if cap:
            return int(cap)
    except Exception:
        pass
    return 64 << 20


def _pick_div_tile(padded, max_tile=512, align=128):
    """Largest tile <= max_tile that divides `padded` (both multiples of align)."""
    if padded <= max_tile:
        return padded
    t = max_tile
    while t > align and padded % t != 0:
        t //= 2
    return t


def _pick_tm(batch, sublane, max_tile=512):
    """M tile: sublane-aligned, <= max_tile, with a <=25% padding-waste guard."""
    b_al = _round_up(batch, sublane)
    if b_al <= max_tile:
        return b_al
    for t in (512, 256, 128):
        padded = _round_up(b_al, t)
        if (padded - b_al) * 4 <= padded:  # waste <= 25%
            return t
    return 128


# ----------------------------- kernels ------------------------------------


def _linear_bias_kernel(x_ref, w_ref, b_ref, o_ref):
    """Full-K-resident tile: one MXU matmul + bias, written once."""
    o_ref[...] = (
        jnp.dot(x_ref[...], w_ref[...], preferred_element_type=jnp.float32)
        + b_ref[...]
    ).astype(o_ref.dtype)


def _linear_bias_kernel_ktiled(x_ref, w_ref, b_ref, o_ref, acc_ref):
    """K-tiled variant: f32 VMEM accumulator, bias added in the epilogue."""
    k = pl.program_id(2)

    @pl.when(k == 0)
    def _init():
        acc_ref[...] = jnp.zeros_like(acc_ref)

    acc_ref[...] += jnp.dot(
        x_ref[...], w_ref[...], preferred_element_type=jnp.float32
    )

    @pl.when(k == pl.num_programs(2) - 1)
    def _finalize():
        o_ref[...] = (acc_ref[...] + b_ref[...]).astype(o_ref.dtype)


# ----------------------------- wrapper ------------------------------------


def prepare_two_head_params(w, b, *, use_bf16_mxu=True):
    """Pad + cast the Linear parameters ONCE, outside the hot path.

    w : [D, nc1 + nc2]   b : [1, nc1 + nc2]
    Returns (w_padded [D_pad, NC_pad] (bf16|f32), b_padded [1, NC_pad] f32).
    The K-tail of W is zero-filled, which keeps the contraction exact.
    """
    D, NC = w.shape
    assert b.shape == (1, NC)
    D_pad = _round_up(D, 128)
    NC_pad = _round_up(NC, 128)
    param_dtype = jnp.bfloat16 if use_bf16_mxu else jnp.float32
    w_p = jnp.zeros((D_pad, NC_pad), param_dtype).at[:D, :NC].set(
        w.astype(param_dtype)
    )
    b_p = jnp.zeros((1, NC_pad), jnp.float32).at[:, :NC].set(
        b.astype(jnp.float32)
    )
    return w_p, b_p


@functools.partial(jax.jit, static_argnames=("nc1", "nc2", "force_k_tiling"))
def two_head_forward(x, w_p, b_p, nc1, nc2, force_k_tiling=False):
    """Pallas implementation of Two_head.forward with a Linear backbone.

    x   : [B, D]                 activations (any float dtype)
    w_p : [D_pad, NC_pad]        pre-padded weights (bf16 or f32)
    b_p : [1, NC_pad]  f32       pre-padded bias
    returns (out1 [B, nc1], out2 [B, nc2]) in float32.
    """
    B, D = x.shape
    D_pad, NC_pad = w_p.shape
    NC = nc1 + nc2
    assert NC <= NC_pad and D <= D_pad and b_p.shape == (1, NC_pad)

    in_dtype = w_p.dtype
    in_bytes = jnp.dtype(in_dtype).itemsize
    # bf16 packs 16 rows per sublane group; f32 packs 8.
    sublane = 16 if in_dtype == jnp.bfloat16 else 8

    # ---- tile selection -------------------------------------------------
    tm = _pick_tm(B, sublane)
    tn = _pick_div_tile(NC_pad, max_tile=512, align=128)

    B_pad = _round_up(B, tm)
    m_blocks = B_pad // tm
    n_blocks = NC_pad // tn
    # Expose >= 2 parallel blocks when possible so v7x's two TCs both work.
    if m_blocks * n_blocks < 2 and tn % 256 == 0:
        tn //= 2
        n_blocks = NC_pad // tn

    # ---- K strategy: full-K residency vs. K-tiled accumulator -----------
    vmem_cap = _vmem_capacity_bytes()
    vmem_budget = int(vmem_cap * 0.6)  # headroom below physical VMEM

    def footprint(tk, with_acc):
        f = (
            2 * (tm * tk + tk * tn) * in_bytes  # x, w blocks (double-buffered)
            + 2 * tm * tn * 4                   # output block (double-buffered)
            + 2 * tn * 4                        # bias block (double-buffered)
        )
        if with_acc:
            f += tm * tn * 4                    # f32 accumulator scratch
        return f

    use_k_grid = force_k_tiling or footprint(D_pad, False) > vmem_budget
    if use_k_grid:
        tk = _pick_div_tile(D_pad, max_tile=512, align=128)
    else:
        tk = D_pad

    vmem_limit = int(
        min(vmem_budget, footprint(tk, use_k_grid) + (8 << 20))
    )

    # ---- pad activations (K tail zero-filled; padded M rows are discarded)
    x_p = jnp.zeros((B_pad, D_pad), in_dtype).at[:B, :D].set(
        x.astype(in_dtype)
    )

    # ---- pallas call -----------------------------------------------------
    if use_k_grid:
        grid = (m_blocks, n_blocks, D_pad // tk)
        y_pad = pl.pallas_call(
            _linear_bias_kernel_ktiled,
            out_shape=jax.ShapeDtypeStruct((B_pad, NC_pad), jnp.float32),
            grid_spec=pltpu.PrefetchScalarGridSpec(
                num_scalar_prefetch=0,
                grid=grid,
                in_specs=[
                    pl.BlockSpec((tm, tk), lambda i, j, k: (i, k)),  # x
                    pl.BlockSpec((tk, tn), lambda i, j, k: (k, j)),  # w
                    pl.BlockSpec((1, tn), lambda i, j, k: (0, j)),   # bias
                ],
                out_specs=pl.BlockSpec((tm, tn), lambda i, j, k: (i, j)),
                scratch_shapes=[pltpu.VMEM((tm, tn), jnp.float32)],
            ),
            compiler_params=pltpu.CompilerParams(
                dimension_semantics=("parallel", "parallel", "arbitrary"),
                vmem_limit_bytes=vmem_limit,
            ),
        )(x_p, w_p, b_p)
    else:
        grid = (m_blocks, n_blocks)
        y_pad = pl.pallas_call(
            _linear_bias_kernel,
            out_shape=jax.ShapeDtypeStruct((B_pad, NC_pad), jnp.float32),
            grid_spec=pltpu.PrefetchScalarGridSpec(
                num_scalar_prefetch=0,
                grid=grid,
                in_specs=[
                    pl.BlockSpec((tm, tk), lambda i, j: (i, 0)),  # x (full K)
                    pl.BlockSpec((tk, tn), lambda i, j: (0, j)),  # w (full K)
                    pl.BlockSpec((1, tn), lambda i, j: (0, j)),   # bias
                ],
                out_specs=pl.BlockSpec((tm, tn), lambda i, j: (i, j)),
            ),
            compiler_params=pltpu.CompilerParams(
                dimension_semantics=("parallel", "parallel"),
                vmem_limit_bytes=vmem_limit,
            ),
        )(x_p, w_p, b_p)

    # Un-pad, then split heads (same semantics as the PyTorch slicing).
    y = y_pad[:B, :NC]
    out1 = y[:, :nc1]
    out2 = y[:, nc1 : nc1 + nc2]
    return out1, out2


# ------------------------------- demo --------------------------------------


if __name__ == "__main__":
    B, D_in = 8, 32
    nc1, nc2 = 4, 6
    NC = nc1 + nc2

    key = jax.random.PRNGKey(0)
    kx, kw, kb = jax.random.split(key, 3)
    x = jax.random.normal(kx, (B, D_in), dtype=jnp.float32)
    w = jax.random.normal(kw, (D_in, NC), dtype=jnp.float32) * 0.1
    b = jax.random.normal(kb, (1, NC), dtype=jnp.float32) * 0.1

    # ---- default bf16 MXU path (checked vs a bf16-cast reference) --------
    w_p, b_p = prepare_two_head_params(w, b, use_bf16_mxu=True)
    out1, out2 = two_head_forward(x, w_p, b_p, nc1, nc2)
    jax.block_until_ready((out1, out2))

    x_bf = x.astype(jnp.bfloat16).astype(jnp.float32)
    w_bf = w.astype(jnp.bfloat16).astype(jnp.float32)
    y_ref_bf = x_bf @ w_bf + b
    assert out1.shape == (B, nc1) and out2.shape == (B, nc2)
    assert jnp.allclose(out1, y_ref_bf[:, :nc1], atol=1e-3)
    assert jnp.allclose(out2, y_ref_bf[:, nc1 : nc1 + nc2], atol=1e-3)

    # ---- f32 path: exact check against the reference ---------------------
    w_p32, b_p32 = prepare_two_head_params(w, b, use_bf16_mxu=False)
    o1_32, o2_32 = two_head_forward(x, w_p32, b_p32, nc1, nc2)
    jax.block_until_ready((o1_32, o2_32))
    y_ref = x @ w + b
    assert jnp.allclose(o1_32, y_ref[:, :nc1], atol=1e-5)
    assert jnp.allclose(o2_32, y_ref[:, nc1 : nc1 + nc2], atol=1e-5)

    # ---- exercise the K-tiled (3-D grid, accumulator) code path too ------
    o1_k, o2_k = two_head_forward(x, w_p32, b_p32, nc1, nc2,
                                  force_k_tiling=True)
    jax.block_until_ready((o1_k, o2_k))
    assert jnp.allclose(o1_k, y_ref[:, :nc1], atol=1e-5)
    assert jnp.allclose(o2_k, y_ref[:, nc1 : nc1 + nc2], atol=1e-5)

    # ---- a slightly larger shape: exercises the N-split (>=2 parallel blocks)
    B2, D2, n1b, n2b = 64, 256, 128, 128
    k2 = jax.random.PRNGKey(1)
    kx2, kw2, kb2 = jax.random.split(k2, 3)
    x2 = jax.random.normal(kx2, (B2, D2), dtype=jnp.float32)
    w2 = jax.random.normal(kw2, (D2, n1b + n2b), dtype=jnp.float32) * 0.05
    b2 = jax.random.normal(kb2, (1, n1b + n2b), dtype=jnp.float32) * 0.05
    w2_p, b2_p = prepare_two_head_params(w2, b2, use_bf16_mxu=True)
    a1, a2 = two_head_forward(x2, w2_p, b2_p, n1b, n2b)
    jax.block_until_ready((a1, a2))
    y2_ref = (x2.astype(jnp.bfloat16).astype(jnp.float32)
              @ w2.astype(jnp.bfloat16).astype(jnp.float32) + b2)
    assert jnp.allclose(a1, y2_ref[:, :n1b], atol=5e-3)
    assert jnp.allclose(a2, y2_ref[:, n1b : n1b + n2b], atol=5e-3)

    print("KERNEL_OK")
</pallas_src>

<mosaic_0001>
module attributes {stable_mosaic.version = 11 : i64} {
  func.func @_linear_bias_kernel(%arg0: i32, %arg1: i32, %arg2: memref<16x128xbf16, #tpu.memory_space<vmem>>, %arg3: memref<128x128xbf16, #tpu.memory_space<vmem>>, %arg4: memref<1x128xf32, #tpu.memory_space<vmem>>, %arg5: memref<16x128xf32, #tpu.memory_space<vmem>>) attributes {dimension_semantics = [#tpu.dimension_semantics<parallel>, #tpu.dimension_semantics<parallel>], iteration_bounds = array<i64: 1, 1>, scalar_prefetch = 0 : i64, scratch_operands = 0 : i64, tpu.core_type = #tpu.core_type<tc>, window_params = [{transform_indices = @transform_0, window_bounds = array<i64: 16, 128>}, {transform_indices = @transform_1, window_bounds = array<i64: 128, 128>}, {transform_indices = @transform_2, window_bounds = array<i64: 1, 128>}, {transform_indices = @transform_3, window_bounds = array<i64: 16, 128>}]} {
    %c0 = arith.constant 0 : index
    %c0_0 = arith.constant 0 : index
    %0 = vector.load %arg2[%c0, %c0_0] : memref<16x128xbf16, #tpu.memory_space<vmem>>, vector<16x128xbf16>
    %c0_1 = arith.constant 0 : index
    %c0_2 = arith.constant 0 : index
    %1 = vector.load %arg3[%c0_1, %c0_2] : memref<128x128xbf16, #tpu.memory_space<vmem>>, vector<128x128xbf16>
    %cst = arith.constant dense<0.000000e+00> : vector<16x128xf32>
    %2 = tpu.matmul %0, %1, %cst {dimension_numbers = #tpu.dot_dimension_numbers<[1], [0], [0], [1], [0, 0, 1, 1], [], []>} : vector<16x128xbf16>, vector<128x128xbf16>, vector<16x128xf32> -> vector<16x128xf32>
    %c0_3 = arith.constant 0 : index
    %c0_4 = arith.constant 0 : index
    %3 = vector.load %arg4[%c0_3, %c0_4] : memref<1x128xf32, #tpu.memory_space<vmem>>, vector<1x128xf32>
    %4 = vector.broadcast %3 : vector<1x128xf32> to vector<16x128xf32>
    %5 = arith.addf %2, %4 : vector<16x128xf32>
    %c0_5 = arith.constant 0 : index
    %c0_6 = arith.constant 0 : index
    %6 = vector.load %arg5[%c0_5, %c0_6] : memref<16x128xf32, #tpu.memory_space<vmem>>, vector<16x128xf32>
    tpu.vector_store %arg5[%c0_5, %c0_6], %5 {strides = array<i32>} : memref<16x128xf32, #tpu.memory_space<vmem>>, vector<16x128xf32>,
    return
  }
  func.func @transform_0(%arg0: i32, %arg1: i32) -> (i32, i32) {
    %c0_i32 = arith.constant 0 : i32
    %c0_i32_0 = arith.constant 0 : i32
    return %arg0, %c0_i32 : i32, i32
  }
  func.func @transform_1(%arg0: i32, %arg1: i32) -> (i32, i32) {
    %c0_i32 = arith.constant 0 : i32
    %c0_i32_0 = arith.constant 0 : i32
    return %c0_i32, %arg1 : i32, i32
  }
  func.func @transform_2(%arg0: i32, %arg1: i32) -> (i32, i32) {
    %c0_i32 = arith.constant 0 : i32
    %c0_i32_0 = arith.constant 0 : i32
    return %c0_i32, %arg1 : i32, i32
  }
  func.func @transform_3(%arg0: i32, %arg1: i32) -> (i32, i32) {
    %c0_i32 = arith.constant 0 : i32
    return %arg0, %arg1 : i32, i32
  }
}

</mosaic_0001>

<llo_original>
// kernel: two_head_forward.1
$region0: #{two_head_forward.1}
  #allocation0 [shape = 'u32[]', space=smem, size = 0x4, offset = 0x4, fixed_abs, tag = 'smem constant byte address 0x4 - core index']
  #allocation1 [shape = 'u32[72,128]{1,0:T(1,128)}', space=vmem, size = 0x9000, scoped, tag = 'internal scratch']
  %s0 = inlined_call_operand.vmem [shape: bf16[16,128], index: 0, kind: input, shape index: {}]
  %s1 = inlined_call_operand.hbm [shape: bf16[128,128], index: 1, kind: input, shape index: {}]
  %s2 = inlined_call_operand.vmem [shape: f32[1,128], index: 2, kind: input, shape index: {}]
  %s3 = inlined_call_operand.vmem [shape: f32[16,128], index: 3, kind: output, shape index: {}]
  %s4 = sld [smem:[#allocation0]]
  $region26: #{two_head_forward.1} parent=0
    _
  %s6 = ssub.s32 1, %s4
  %s7 = scalar_select 0, %s6, %s4
  $region1: #{two_head_forward.1} parent=0
    #allocation2 [shape = 'u8[32768]{0}', space=vmem, size = 0x8000, scoped, tag = 'input window, operand 1, single buffered']
    #allocation3 [shape = 's32[1]{0}', space=sflag, size = 0x4, scoped, tag = 'scoped memory for two_head_forward.1']
    %8 = vsyncpa [#allocation3], 0
    // Predicated region
    $region2: #{two_head_forward.1} parent=1 // pred_check
      _
    $region3: #{two_head_forward.1} parent=1 // pred_check_branch
      %10 = sbr.rel (0) target = $region5
    $region4: #{two_head_forward.1} parent=1 // pred_region
      _
    $region5: #{two_head_forward.1} parent=1 // pred_fallthru
      _
    // Predicated region
    $region6: #{two_head_forward.1} parent=1 // pred_check
      _
    $region7: #{two_head_forward.1} parent=1 // pred_check_branch
      %12 = sbr.rel (0) target = $region9
    $region8: #{two_head_forward.1} parent=1 // pred_region
      %14 = vsyncadd [#allocation3], 0
      %s15 = sshll.u32 %s1, 4
      %s16 = int_to_ptr.hbm [resolvable:$true] %s15
      %s17 = sshll.u32 [#allocation2], 4
      %s18 = int_to_ptr.vmem [resolvable:$true] %s17
      %23 = dma.hbm_to_vmem [thread:$0]  %s16, 1024, %s18, [#allocation3], 64, 64, 4
    $region9: #{two_head_forward.1} parent=1 // pred_fallthru
      _
    // Predicated region
    $region10: #{two_head_forward.1} parent=1 // pred_check
      _
    $region11: #{two_head_forward.1} parent=1 // pred_check_branch
      %25 = sbr.rel (0) target = $region13
    $region12: #{two_head_forward.1} parent=1 // pred_region
      _
    $region13: #{two_head_forward.1} parent=1 // pred_fallthru
      _
    // Predicated region
    $region14: #{two_head_forward.1} parent=1 // pred_check
      _
    $region15: #{two_head_forward.1} parent=1 // pred_check_branch
      %27 = sbr.rel (0) target = $region17
    $region16: #{two_head_forward.1} parent=1 // pred_region
      %29 = dma.done [#allocation3], 1024
    $region17: #{two_head_forward.1} parent=1 // pred_fallthru
      _
    %v30 = vld [vmem:[%s0] sm:$0xf]
    %v31 = vld [vmem:[%s0 + $0x4] sm:$0xf]
    %v32 = vld [vmem:[#allocation2] sm:$0xf]
    %v33 = vld [vmem:[#allocation2 + $0x4] sm:$0xf]
    %v34 = vld [vmem:[#allocation2 + $0x8] sm:$0xf]
    %v35 = vld [vmem:[#allocation2 + $0xc] sm:$0xf]
    %v36 = vld [vmem:[#allocation2 + $0x10] sm:$0xf]
    %v37 = vld [vmem:[#allocation2 + $0x14] sm:$0xf]
    %v38 = vld [vmem:[#allocation2 + $0x18] sm:$0xf]
    %v39 = vld [vmem:[#allocation2 + $0x1c] sm:$0xf]
    %v40 = vld [vmem:[#allocation2 + $0x20] sm:$0xf]
    %v41 = vld [vmem:[#allocation2 + $0x24] sm:$0xf]
    %v42 = vld [vmem:[#allocation2 + $0x28] sm:$0xf]
    %v43 = vld [vmem:[#allocation2 + $0x2c] sm:$0xf]
    %v44 = vld [vmem:[#allocation2 + $0x30] sm:$0xf]
    %v45 = vld [vmem:[#allocation2 + $0x34] sm:$0xf]
    %v46 = vld [vmem:[#allocation2 + $0x38] sm:$0xf]
    %v47 = vld [vmem:[#allocation2 + $0x3c] sm:$0xf]
    %v48 = vld [vmem:[%s2] sm:$0x1]
    %v50 = vperm.slane %v48, 0
    %v54 = vunpack.c.l.b16 %v30
    %v55 = vunpack.c.l.b16 %v31
    %v56 = vpack.c.b16 %v55, %v54
    %v74 = vunpack.c.l.b16 %v32
    %v75 = vunpack.c.l.b16 %v33
    %v76 = vunpack.c.l.b16 %v34
    %v77 = vunpack.c.l.b16 %v35
    %v78 = vunpack.c.l.b16 %v36
    %v79 = vunpack.c.l.b16 %v37
    %v80 = vunpack.c.l.b16 %v38
    %v81 = vunpack.c.l.b16 %v39
    %v82 = vunpack.c.l.b16 %v40
    %v83 = vunpack.c.l.b16 %v41
    %v84 = vunpack.c.l.b16 %v42
    %v85 = vunpack.c.l.b16 %v43
    %v86 = vunpack.c.l.b16 %v44
    %v87 = vunpack.c.l.b16 %v45
    %v88 = vunpack.c.l.b16 %v46
    %v89 = vunpack.c.l.b16 %v47
    %v90 = vpack.c.b16 %v75, %v74
    %v91 = vpack.c.b16 %v77, %v76
    %v92 = vpack.c.b16 %v79, %v78
    %v93 = vpack.c.b16 %v81, %v80
    %v94 = vpack.c.b16 %v83, %v82
    %v95 = vpack.c.b16 %v85, %v84
    %v96 = vpack.c.b16 %v87, %v86
    %v97 = vpack.c.b16 %v89, %v88
    %106 = vmatpush.bf16.msra.mxu0 %v97
    %107 = vmatpush.bf16.msra.mxu0 %v96
    %108 = vmatpush.bf16.msra.mxu0 %v95
    %109 = vmatpush.bf16.msra.mxu0 %v94
    %110 = vmatpush.bf16.msra.mxu0 %v93
    %111 = vmatpush.bf16.msra.mxu0 %v92
    %112 = vmatpush.bf16.msra.mxu0 %v91
    %113 = vmatpush.bf16.msra.mxu0 %v90
    %114 = vmatmul.bf16.gmra.mxu0 %v56
    %v115 = vpop.f32.mrf.mxu0
    %v116 = vadd.f32 %v50, %v115
    %v117 = vpop.f32.mrf.mxu0
    %v118 = vadd.f32 %v50, %v117
    %119 = vdwg.mxu0
    %120 = vst [vmem:[%s3] sm:$0xff] %v116
    %121 = vst [vmem:[%s3 + $0x8] sm:$0xff] %v118
    // Predicated region
    $region18: #{two_head_forward.1} parent=1 // pred_check
      _
    $region19: #{two_head_forward.1} parent=1 // pred_check_branch
      %123 = sbr.rel (0) target = $region21
    $region20: #{two_head_forward.1} parent=1 // pred_region
      _
    $region21: #{two_head_forward.1} parent=1 // pred_fallthru
      _
    // Predicated region
    $region22: #{two_head_forward.1} parent=1 // pred_check
      _
    $region23: #{two_head_forward.1} parent=1 // pred_check_branch
      %125 = sbr.rel (0) target = $region25
    $region24: #{two_head_forward.1} parent=1 // pred_region
      _
    $region25: #{two_head_forward.1} parent=1 // pred_fallthru
      _
    %126 = vsyncpa [#allocation3], 1

</llo_original>
